<compile_context>
chip_gen: v6e
topology: v6e:2x2x1
jax: 0.10.0
libtpu: 0.0.40
codegen_flags: <defaults>
</compile_context>

<pallas_src>
import functools

import jax
import jax.numpy as jnp
from jax.experimental import pallas as pl
from jax.experimental.pallas import tpu as pltpu


_F32_EPS = float(jnp.finfo(jnp.float32).eps)  # == torch.finfo(torch.float32).eps


def _round_up(x, m):
    return (x + m - 1) // m * m


def _stce_kernel(o_ref, t_ref, sum_ref, cnt_ref, *,
                 n_rows, tm, ignore_index, normalize_targets):
    """One batch tile: (tm, C) logits + targets -> per-tile (loss_sum, count)."""
    logits = o_ref[...].astype(jnp.float32)          # (tm, C)
    tgt = t_ref[...].astype(jnp.float32)             # (tm, C)

    valid = tgt != jnp.float32(ignore_index)

    if n_rows % tm != 0:
        # Ragged last row-tile: rows past n_rows hold unspecified VMEM data.
        i = pl.program_id(0)
        row_id = i * tm + jax.lax.broadcasted_iota(jnp.int32, logits.shape, 0)
        row_ok = row_id < n_rows
        valid = jnp.logical_and(valid, row_ok)
        # Make out-of-bounds logits benign so exp/log cannot produce NaN/Inf.
        logits = jnp.where(row_ok, logits, 0.0)

    validf = valid.astype(jnp.float32)
    # where() (not multiply) so garbage/NaN in masked entries cannot leak.
    vt = jnp.where(valid, tgt, 0.0)                   # un-normalized valid targets

    # log_softmax pieces, per row (class axis = lanes).
    m = jnp.max(logits, axis=1, keepdims=True)                               # (tm,1)
    lse = jnp.log(jnp.sum(jnp.exp(logits - m), axis=1, keepdims=True))       # (tm,1)

    s = jnp.sum(vt, axis=1, keepdims=True)                                   # (tm,1)
    dot = jnp.sum(vt * logits, axis=1, keepdims=True)                        # (tm,1)

    # sum(-vt_norm * (logits - m - lse)) == ((m + lse) * S - dot) / (eps + S)
    per_sample = (m + lse) * s - dot
    if normalize_targets:
        # Per-row reciprocal (EUP) instead of a (tm, C) element-wise divide.
        # (approx=False keeps full f32 accuracy; the win is per-row vs per-elem.)
        per_sample = per_sample * pl.reciprocal(jnp.float32(_F32_EPS) + s)

    row_has_valid = (jnp.sum(validf, axis=1, keepdims=True) > 0.0).astype(jnp.float32)

    sum_ref[...] = jnp.broadcast_to(jnp.sum(per_sample), sum_ref.shape)
    cnt_ref[...] = jnp.broadcast_to(jnp.sum(row_has_valid), cnt_ref.shape)


def soft_target_cross_entropy_loss(output, target, *, ignore_index=-100,
                                   normalize_targets=True, tm=512):
    """Mean-reduced soft-target cross-entropy (module defaults).

    output: (N, C) logits.  target: (N, C) soft targets or (N,) class indices.
    """
    # TODO(synk): reduction="none" (per-sample output) path not implemented; the
    # module's default reduction="mean" is what this kernel computes.
    output = jnp.asarray(output)
    target = jnp.asarray(target)
    n, c = output.shape
    if target.ndim == 1:
        # TODO(synk): dedicated class-index fast path (SMEM indices, no one-hot
        # HBM stream).  For now build the one-hot in the logits' dtype so we do
        # not widen the target stream to f32.
        oh_dtype = (output.dtype if jnp.issubdtype(output.dtype, jnp.floating)
                    else jnp.float32)
        target = jax.nn.one_hot(target.astype(jnp.int32), c, dtype=oh_dtype)
    assert target.shape == output.shape

    o_bytes = jnp.dtype(output.dtype).itemsize
    t_bytes = jnp.dtype(target.dtype).itemsize
    c_lanes = _round_up(c, 128)       # physical lane footprint of one row in VMEM

    # Generation-aware VMEM budget: ~40% of this chip's VMEM for the
    # double-buffered input tiles plus in-kernel f32 temporaries.
    try:
        vmem_cap = int(getattr(pltpu.get_tpu_info(), "vmem_capacity_bytes",
                               64 << 20))
    except Exception:  # pragma: no cover - interpret mode / older jax fallback
        vmem_cap = 64 << 20
    budget = int(0.4 * vmem_cap)
    # 2 pipeline buffers per input + ~4 full-tile f32 temporaries in-kernel.
    per_row_bytes = 2 * c_lanes * (o_bytes + t_bytes) + 4 * c_lanes * 4
    tm_cap = max(8, (budget // per_row_bytes) // 8 * 8)
    # TODO(synk): for very wide C (tm_cap << 64, e.g. big vocab on v5e) add a
    # class-axis grid with an online log-sum-exp instead of shrinking the tile.
    tm_eff = max(8, (min(tm, tm_cap) // 8) * 8)
    if n <= tm_eff:
        tm_eff = n                    # single block covering all rows
    grid_m = pl.cdiv(n, tm_eff)

    vmem_limit = int(min(vmem_cap, tm_eff * per_row_bytes + (4 << 20)))

    kernel = functools.partial(
        _stce_kernel,
        n_rows=n,
        tm=tm_eff,
        ignore_index=ignore_index,
        normalize_targets=normalize_targets,
    )

    cost = pl.CostEstimate(
        flops=8 * n * c,
        transcendentals=n * c + 2 * n,
        bytes_accessed=n * c * (o_bytes + t_bytes) + grid_m * 8 * 128 * 4 * 2,
    )

    sums, cnts = pl.pallas_call(
        kernel,
        out_shape=(jax.ShapeDtypeStruct((grid_m * 8, 128), jnp.float32),
                   jax.ShapeDtypeStruct((grid_m * 8, 128), jnp.float32)),
        grid=(grid_m,),
        in_specs=[
            pl.BlockSpec((tm_eff, c), lambda i: (i, 0)),
            pl.BlockSpec((tm_eff, c), lambda i: (i, 0)),
        ],
        out_specs=(
            pl.BlockSpec((8, 128), lambda i: (i, 0)),
            pl.BlockSpec((8, 128), lambda i: (i, 0)),
        ),
        compiler_params=pltpu.CompilerParams(
            dimension_semantics=("parallel",),   # independent tiles -> megacore
            vmem_limit_bytes=vmem_limit,
        ),
        cost_estimate=cost,
    )(output, target)

    # Tiny final reduce + divide in JAX (each tile wrote its scalar broadcast
    # into an (8,128) block; row 0, lane 0 of each block carries the value).
    total = jnp.sum(sums[::8, 0])
    count = jnp.maximum(jnp.sum(cnts[::8, 0]), 1.0)
    return total / count


def _reference(output, target, ignore_index=-100, normalize_targets=True):
    valid_mask = target != ignore_index
    valid_targets = target.astype(jnp.float32) * valid_mask.astype(jnp.float32)
    if normalize_targets:
        valid_targets = valid_targets / (
            _F32_EPS + valid_targets.sum(axis=1, keepdims=True))
    log_sm = jax.nn.log_softmax(output.astype(jnp.float32), axis=-1)
    per_sample = jnp.sum(-valid_targets * log_sm, axis=-1)
    denom = jnp.maximum(
        jnp.sum((jnp.sum(valid_mask, axis=-1) > 0).astype(jnp.float32)), 1.0)
    return per_sample.sum() / denom


if __name__ == "__main__":
    # Test 1: soft targets with ignore_index entries, f32 (module defaults).
    N, C = 8, 16
    ko, kt = jax.random.split(jax.random.PRNGKey(0))
    output = jax.random.normal(ko, (N, C), dtype=jnp.float32)
    target = jax.random.uniform(kt, (N, C), dtype=jnp.float32)
    target = target.at[1, 3].set(-100.0)   # single ignored entry
    target = target.at[2, :].set(-100.0)   # fully-ignored sample (not counted)

    loss = jax.block_until_ready(soft_target_cross_entropy_loss(output, target))
    ref = _reference(output, target)
    assert jnp.isfinite(loss), "loss is not finite"
    assert jnp.allclose(loss, ref, atol=1e-5, rtol=1e-5), (loss, ref)

    # Test 2: ragged batch (N not a multiple of the row tile), bf16 inputs,
    # multi-tile grid exercising the in-kernel row masking + partial reduce.
    N2, C2 = 13, 24
    ko2, kt2 = jax.random.split(jax.random.PRNGKey(1))
    out2 = jax.random.normal(ko2, (N2, C2), dtype=jnp.bfloat16)
    tgt2 = jax.random.uniform(kt2, (N2, C2), dtype=jnp.bfloat16)
    tgt2 = tgt2.at[0, :].set(-100.0)
    loss2 = jax.block_until_ready(
        soft_target_cross_entropy_loss(out2, tgt2, tm=8))
    ref2 = _reference(out2, tgt2)
    assert jnp.allclose(loss2, ref2, atol=1e-4, rtol=1e-4), (loss2, ref2)

    # Test 3: hard-label (class index) targets -> one-hot path.
    idx = jax.random.randint(jax.random.PRNGKey(2), (N,), 0, C)
    loss3 = jax.block_until_ready(soft_target_cross_entropy_loss(output, idx))
    ref3 = _reference(output, jax.nn.one_hot(idx, C, dtype=jnp.float32))
    assert jnp.allclose(loss3, ref3, atol=1e-5, rtol=1e-5), (loss3, ref3)

    print("KERNEL_OK")
</pallas_src>

<mosaic_0001>
module attributes {stable_mosaic.version = 11 : i64} {
  func.func @_stce_kernel(%arg0: i32, %arg1: memref<8x16xf32, #tpu.memory_space<vmem>>, %arg2: memref<8x16xf32, #tpu.memory_space<vmem>>, %arg3: memref<8x128xf32, #tpu.memory_space<vmem>>, %arg4: memref<8x128xf32, #tpu.memory_space<vmem>>) attributes {dimension_semantics = [#tpu.dimension_semantics<parallel>], iteration_bounds = array<i64: 1>, scalar_prefetch = 0 : i64, scratch_operands = 0 : i64, tpu.core_type = #tpu.core_type<tc>, window_params = [{transform_indices = @transform_0, window_bounds = array<i64: 8, 16>}, {transform_indices = @transform_1, window_bounds = array<i64: 8, 16>}, {transform_indices = @transform_2, window_bounds = array<i64: 8, 128>}, {transform_indices = @transform_3, window_bounds = array<i64: 8, 128>}]} {
    %c0 = arith.constant 0 : index
    %c0_0 = arith.constant 0 : index
    %0 = vector.load %arg1[%c0, %c0_0] : memref<8x16xf32, #tpu.memory_space<vmem>>, vector<8x16xf32>
    %c0_1 = arith.constant 0 : index
    %c0_2 = arith.constant 0 : index
    %1 = vector.load %arg2[%c0_1, %c0_2] : memref<8x16xf32, #tpu.memory_space<vmem>>, vector<8x16xf32>
    %cst = arith.constant -1.000000e+02 : f32
    %2 = vector.broadcast %cst : f32 to vector<8x16xf32>
    %3 = arith.cmpf one, %1, %2 : vector<8x16xf32>
    %4 = arith.extui %3 : vector<8x16xi1> to vector<8x16xi32>
    %5 = arith.sitofp %4 : vector<8x16xi32> to vector<8x16xf32>
    %cst_3 = arith.constant 0.000000e+00 : f32
    %6 = vector.broadcast %cst_3 : f32 to vector<8x16xf32>
    %7 = arith.select %3, %1, %6 : vector<8x16xi1>, vector<8x16xf32>
    %cst_4 = arith.constant dense<0xFF800000> : vector<8xf32>
    %8 = vector.multi_reduction <maximumf>, %0, %cst_4 [1] : vector<8x16xf32> to vector<8xf32>
    %9 = vector.shape_cast %8 : vector<8xf32> to vector<8x1xf32>
    %10 = vector.broadcast %9 : vector<8x1xf32> to vector<8x16xf32>
    %11 = arith.subf %0, %10 : vector<8x16xf32>
    %12 = math.exp %11 : vector<8x16xf32>
    %cst_5 = arith.constant dense<0.000000e+00> : vector<8xf32>
    %13 = vector.multi_reduction <add>, %12, %cst_5 [1] : vector<8x16xf32> to vector<8xf32>
    %14 = vector.shape_cast %13 : vector<8xf32> to vector<8x1xf32>
    %15 = math.log %14 : vector<8x1xf32>
    %cst_6 = arith.constant dense<0.000000e+00> : vector<8xf32>
    %16 = vector.multi_reduction <add>, %7, %cst_6 [1] : vector<8x16xf32> to vector<8xf32>
    %17 = vector.shape_cast %16 : vector<8xf32> to vector<8x1xf32>
    %18 = arith.mulf %7, %0 : vector<8x16xf32>
    %cst_7 = arith.constant dense<0.000000e+00> : vector<8xf32>
    %19 = vector.multi_reduction <add>, %18, %cst_7 [1] : vector<8x16xf32> to vector<8xf32>
    %20 = vector.shape_cast %19 : vector<8xf32> to vector<8x1xf32>
    %21 = arith.addf %9, %15 : vector<8x1xf32>
    %22 = arith.mulf %21, %17 : vector<8x1xf32>
    %23 = arith.subf %22, %20 : vector<8x1xf32>
    %cst_8 = arith.constant 1.1920929E-7 : f32
    %24 = vector.broadcast %cst_8 : f32 to vector<8x1xf32>
    %25 = arith.addf %24, %17 : vector<8x1xf32>
    %26 = tpu.reciprocal %25 : vector<8x1xf32> -> vector<8x1xf32>
    %27 = arith.mulf %23, %26 : vector<8x1xf32>
    %cst_9 = arith.constant dense<0.000000e+00> : vector<8xf32>
    %28 = vector.multi_reduction <add>, %5, %cst_9 [1] : vector<8x16xf32> to vector<8xf32>
    %29 = vector.shape_cast %28 : vector<8xf32> to vector<8x1xf32>
    %cst_10 = arith.constant 0.000000e+00 : f32
    %30 = vector.broadcast %cst_10 : f32 to vector<8x1xf32>
    %31 = arith.cmpf ogt, %29, %30 : vector<8x1xf32>
    %32 = arith.extui %31 : vector<8x1xi1> to vector<8x1xi32>
    %33 = arith.sitofp %32 : vector<8x1xi32> to vector<8x1xf32>
    %34 = vector.shape_cast %27 : vector<8x1xf32> to vector<1x8x1xf32>
    %cst_11 = arith.constant dense<0.000000e+00> : vector<1xf32>
    %35 = vector.multi_reduction <add>, %34, %cst_11 [1, 2] : vector<1x8x1xf32> to vector<1xf32>
    %36 = vector.shape_cast %35 : vector<1xf32> to vector<1x1x1xf32>
    %37 = vector.extract %36[0, 0, 0] : f32 from vector<1x1x1xf32>
    %38 = vector.broadcast %37 : f32 to vector<8x128xf32>
    %c0_12 = arith.constant 0 : index
    %c0_13 = arith.constant 0 : index
    %39 = vector.load %arg3[%c0_12, %c0_13] : memref<8x128xf32, #tpu.memory_space<vmem>>, vector<8x128xf32>
    tpu.vector_store %arg3[%c0_12, %c0_13], %38 {strides = array<i32>} : memref<8x128xf32, #tpu.memory_space<vmem>>, vector<8x128xf32>,
    %40 = vector.shape_cast %33 : vector<8x1xf32> to vector<1x8x1xf32>
    %cst_14 = arith.constant dense<0.000000e+00> : vector<1xf32>
    %41 = vector.multi_reduction <add>, %40, %cst_14 [1, 2] : vector<1x8x1xf32> to vector<1xf32>
    %42 = vector.shape_cast %41 : vector<1xf32> to vector<1x1x1xf32>
    %43 = vector.extract %42[0, 0, 0] : f32 from vector<1x1x1xf32>
    %44 = vector.broadcast %43 : f32 to vector<8x128xf32>
    %c0_15 = arith.constant 0 : index
    %c0_16 = arith.constant 0 : index
    %45 = vector.load %arg4[%c0_15, %c0_16] : memref<8x128xf32, #tpu.memory_space<vmem>>, vector<8x128xf32>
    tpu.vector_store %arg4[%c0_15, %c0_16], %44 {strides = array<i32>} : memref<8x128xf32, #tpu.memory_space<vmem>>, vector<8x128xf32>,
    return
  }
  func.func @transform_0(%arg0: i32) -> (i32, i32) {
    %c0_i32 = arith.constant 0 : i32
    %c0_i32_0 = arith.constant 0 : i32
    return %arg0, %c0_i32 : i32, i32
  }
  func.func @transform_1(%arg0: i32) -> (i32, i32) {
    %c0_i32 = arith.constant 0 : i32
    %c0_i32_0 = arith.constant 0 : i32
    return %arg0, %c0_i32 : i32, i32
  }
  func.func @transform_2(%arg0: i32) -> (i32, i32) {
    %c0_i32 = arith.constant 0 : i32
    %c0_i32_0 = arith.constant 0 : i32
    return %arg0, %c0_i32 : i32, i32
  }
  func.func @transform_3(%arg0: i32) -> (i32, i32) {
    %c0_i32 = arith.constant 0 : i32
    %c0_i32_0 = arith.constant 0 : i32
    return %arg0, %c0_i32 : i32, i32
  }
}

</mosaic_0001>

<llo_original>
// kernel: tpu_custom_call.1
$region0: #{tpu_custom_call.1}
  #allocation0 [shape = 'u32[]', space=smem, size = 0x4, offset = 0x4, fixed_abs, tag = 'smem constant byte address 0x4 - core index']
  #allocation1 [shape = 'u32[144,128]{1,0:T(1,128)}', space=vmem, size = 0x12000, scoped, tag = 'internal scratch']
  %s0 = inlined_call_operand.hbm [shape: f32[8,16], index: 0, kind: input, shape index: {}]
  %s1 = inlined_call_operand.hbm [shape: f32[8,16], index: 1, kind: input, shape index: {}]
  %s2 = inlined_call_operand.hbm [shape: f32[8,128], index: 2, kind: output, shape index: {0}]
  %s3 = inlined_call_operand.hbm [shape: f32[8,128], index: 3, kind: output, shape index: {1}]
  %4 = xla_tuple %s2, %s3
  %s5 = sld [smem:[#allocation0]]
  $region34: #{tpu_custom_call.1} parent=0
    _
  %s7 = ssub.s32 1, %s5
  %s8 = scalar_select 0, %s7, %s5
  $region1: #{tpu_custom_call.1} parent=0
    #allocation2 [shape = 'u8[4096]{0}', space=vmem, size = 0x1000, scoped, tag = 'input window, operand 0, single buffered']
    #allocation3 [shape = 's32[1]{0}', space=sflag, size = 0x4, scoped, tag = 'scoped memory for tpu_custom_call.1']
    #allocation4 [shape = 's32[1]{0}', space=sflag, size = 0x4, scoped, tag = 'scoped memory for tpu_custom_call.1']
    #allocation5 [shape = 'u8[4096]{0}', space=vmem, size = 0x1000, scoped, tag = 'input window, operand 1, single buffered']
    #allocation6 [shape = 's32[1]{0}', space=sflag, size = 0x4, scoped, tag = 'scoped memory for tpu_custom_call.1']
    #allocation7 [shape = 'u8[4096]{0}', space=vmem, size = 0x1000, scoped, tag = 'output window, operand 0, single buffered']
    #allocation8 [shape = 'u8[4096]{0}', space=vmem, size = 0x1000, scoped, tag = 'output window, operand 1, single buffered']
    #allocation9 [shape = 's32[1]{0}', space=sflag, size = 0x4, scoped, tag = 'scoped memory for tpu_custom_call.1']
    %9 = vsyncpa [#allocation3], 0
    %10 = vsyncpa [#allocation6], 0
    %11 = vsyncpa [#allocation4], 0
    %12 = vsyncpa [#allocation9], 0
    // Predicated region
    $region2: #{tpu_custom_call.1} parent=1 // pred_check
      _
    $region3: #{tpu_custom_call.1} parent=1 // pred_check_branch
      %14 = sbr.rel (0) target = $region5
    $region4: #{tpu_custom_call.1} parent=1 // pred_region
      %s16 = ssub.s32 128, 128
      %17 = vsyncadd [#allocation3], %s16
      %s19 = sshll.u32 [#allocation2], 4
      %s20 = int_to_ptr.vmem [resolvable:$true] %s19
      %22 = dma.hbm_to_vmem [thread:$0]  %s0, 128, %s20, [#allocation3]
    $region5: #{tpu_custom_call.1} parent=1 // pred_fallthru
      _
    // Predicated region
    $region6: #{tpu_custom_call.1} parent=1 // pred_check
      _
    $region7: #{tpu_custom_call.1} parent=1 // pred_check_branch
      %24 = sbr.rel (0) target = $region9
    $region8: #{tpu_custom_call.1} parent=1 // pred_region
      %s26 = ssub.s32 128, 128
      %27 = vsyncadd [#allocation6], %s26
      %s29 = sshll.u32 [#allocation5], 4
      %s30 = int_to_ptr.vmem [resolvable:$true] %s29
      %32 = dma.hbm_to_vmem [thread:$0]  %s1, 128, %s30, [#allocation6]
    $region9: #{tpu_custom_call.1} parent=1 // pred_fallthru
      _
    // Predicated region
    $region10: #{tpu_custom_call.1} parent=1 // pred_check
      _
    $region11: #{tpu_custom_call.1} parent=1 // pred_check_branch
      %34 = sbr.rel (0) target = $region13
    $region12: #{tpu_custom_call.1} parent=1 // pred_region
      %35 = dma.done [#allocation3], 128
    $region13: #{tpu_custom_call.1} parent=1 // pred_fallthru
      _
    // Predicated region
    $region14: #{tpu_custom_call.1} parent=1 // pred_check
      _
    $region15: #{tpu_custom_call.1} parent=1 // pred_check_branch
      %37 = sbr.rel (0) target = $region17
    $region16: #{tpu_custom_call.1} parent=1 // pred_region
      %38 = dma.done [#allocation6], 128
    $region17: #{tpu_custom_call.1} parent=1 // pred_fallthru
      _
    %v39 = vld [vmem:[#allocation2] sm:$0xff]
    %v40 = vld [vmem:[#allocation5] sm:$0xff]
    %vm41 = vcmp.ne.f32.partialorder %v40, -100.0
    %v42 = vsel %vm41, 1, 0
    %v43 = vcvt.s32.f32 %v42
    %v44 = vsel %vm41, %v40, 0.0
    %vm45 = vcmask 130048
    %v46 = vsel %vm45, %v39, -inf
    %47 = vmax.xlane.f32.xlu0 %v46
    %v48 = vpop.xlane.xlu0 %47
    %v49 = vsub.f32 %v39, %v48
    %v50 = vmul.f32 %v49, 1.442695
    %v51 = vpow.pop %v50
    %v52 = vsel %vm45, %v51, 0.0
    %53 = vadd.xlane.f32.xlu0 %v52
    %v54 = vpop.xlane.xlu0 %53
    %v55 = vlog2.pop %v54
    %v56 = vmul.f32 %v55, 0.6931472
    %v57 = vsel %vm45, %v44, 0.0
    %58 = vadd.xlane.f32.xlu0 %v57
    %v59 = vpop.xlane.xlu0 %58
    %v60 = vmul.f32 %v44, %v39
    %v61 = vsel %vm45, %v60, 0.0
    %62 = vadd.xlane.f32.xlu0 %v61
    %v63 = vpop.xlane.xlu0 %62
    %v64 = vadd.f32 %v48, %v56
    %v65 = vmul.f32 %v64, %v59
    %v66 = vsub.f32 %v65, %v63
    %v67 = vadd.f32 %v59, 1.1920929e-07
    %v68 = vrcp.pop %v67
    %v69 = vmul.f32 %v66, %v68
    %v70 = vsel %vm45, %v43, 0.0
    %71 = vadd.xlane.f32.xlu0 %v70
    %v72 = vpop.xlane.xlu0 %71
    %vm73 = vcmp.gt.f32.partialorder %v72, 0.0
    %v74 = vsel %vm73, 1, 0
    %v75 = vcvt.s32.f32 %v74
    %vm76 = vcmask 7168
    %v77 = vsel %vm76, %v69, 0.0
    %78 = vadd.xlane.f32.xlu0 %v77
    %v79 = vpop.xlane.xlu0 %78
    %v80 = vrot.slane %v79, 4
    %v81 = vadd.f32 %v79, %v80
    %v82 = vrot.slane %v81, 2
    %v83 = vadd.f32 %v81, %v82
    %v84 = vrot.slane %v83, 1
    %v85 = vadd.f32 %v83, %v84
    %s86 = vtos %v85
    %v87 = vstv %s86
    %88 = vst [vmem:[#allocation7] sm:$0xff] %v87
    %v89 = vsel %vm76, %v75, 0.0
    %90 = vadd.xlane.f32.xlu0 %v89
    %v91 = vpop.xlane.xlu0 %90
    %v92 = vrot.slane %v91, 4
    %v93 = vadd.f32 %v91, %v92
    %v94 = vrot.slane %v93, 2
    %v95 = vadd.f32 %v93, %v94
    %v96 = vrot.slane %v95, 1
    %v97 = vadd.f32 %v95, %v96
    %s98 = vtos %v97
    %v99 = vstv %s98
    %100 = vst [vmem:[#allocation8] sm:$0xff] %v99
    // Predicated region
    $region18: #{tpu_custom_call.1} parent=1 // pred_check
      _
    $region19: #{tpu_custom_call.1} parent=1 // pred_check_branch
      %102 = sbr.rel (0) target = $region21
    $region20: #{tpu_custom_call.1} parent=1 // pred_region
      %s104 = ssub.s32 128, 128
      %105 = vsyncadd [#allocation4], %s104
      %s107 = sshll.u32 [#allocation7], 4
      %s108 = int_to_ptr.vmem [resolvable:$true] %s107
      %110 = dma.vmem_to_hbm [thread:$0]  %s108, 128, %s2, [#allocation4]
    $region21: #{tpu_custom_call.1} parent=1 // pred_fallthru
      _
    // Predicated region
    $region22: #{tpu_custom_call.1} parent=1 // pred_check
      _
    $region23: #{tpu_custom_call.1} parent=1 // pred_check_branch
      %112 = sbr.rel (0) target = $region25
    $region24: #{tpu_custom_call.1} parent=1 // pred_region
      %s114 = ssub.s32 128, 128
      %115 = vsyncadd [#allocation9], %s114
      %s117 = sshll.u32 [#allocation8], 4
      %s118 = int_to_ptr.vmem [resolvable:$true] %s117
      %120 = dma.vmem_to_hbm [thread:$0]  %s118, 128, %s3, [#allocation9]
    $region25: #{tpu_custom_call.1} parent=1 // pred_fallthru
      _
    // Predicated region
    $region26: #{tpu_custom_call.1} parent=1 // pred_check
      _
    $region27: #{tpu_custom_call.1} parent=1 // pred_check_branch
      %122 = sbr.rel (0) target = $region29
    $region28: #{tpu_custom_call.1} parent=1 // pred_region
      %123 = dma.done [#allocation4], 128
    $region29: #{tpu_custom_call.1} parent=1 // pred_fallthru
      _
    // Predicated region
    $region30: #{tpu_custom_call.1} parent=1 // pred_check
      _
    $region31: #{tpu_custom_call.1} parent=1 // pred_check_branch
      %125 = sbr.rel (0) target = $region33
    $region32: #{tpu_custom_call.1} parent=1 // pred_region
      %126 = dma.done [#allocation9], 128
    $region33: #{tpu_custom_call.1} parent=1 // pred_fallthru
      _
    %127 = vsyncpa [#allocation3], 1
    %128 = vsyncpa [#allocation6], 1
    %129 = vsyncpa [#allocation4], 1
    %130 = vsyncpa [#allocation9], 1

</llo_original>
